<compile_context>
chip_gen: v6e
topology: v6e:2x2x1
jax: 0.10.0
libtpu: 0.0.40
codegen_flags: <defaults>
</compile_context>

<pallas_src>
import math

import jax
import jax.numpy as jnp
from jax import lax
from jax.experimental import pallas as pl
from jax.experimental.pallas import tpu as pltpu


def _gelu_exact(x):
    # nn.GELU() default = exact erf formulation: 0.5*x*(1+erf(x/sqrt(2)))
    return 0.5 * x * (1.0 + lax.erf(x * (1.0 / math.sqrt(2.0))))


# ---------------------------------------------------------------------------
# Kernel bodies
# ---------------------------------------------------------------------------

def mlp_kernel_fused(x_ref, w1_ref, w2_ref, o_ref):
    # x_ref:  (tm, C)  activation row tile (input dtype, no upcast)
    # w1_ref: (C, H)   full c_fc weight   (in x out layout, resident in VMEM)
    # w2_ref: (H, C)   full c_proj weight (in x out layout, resident in VMEM)
    # o_ref:  (tm, C)  output row tile
    h = jnp.dot(x_ref[...], w1_ref[...], preferred_element_type=jnp.float32)
    h = _gelu_exact(h)  # exact erf GELU in f32 (matches nn.GELU() default)
    y = jnp.dot(h.astype(w2_ref.dtype), w2_ref[...],
                preferred_element_type=jnp.float32)
    # TODO(synk): dropout is identity in eval/inference; training-mode dropout
    # (PRNG mask via pltpu.prng_*) is not implemented here.
    o_ref[...] = y.astype(o_ref.dtype)


def mlp_kernel_tiled(x_ref, w1_ref, w2_ref, o_ref, acc_ref):
    # x_ref:  (tm, C)   activation row tile
    # w1_ref: (C, th)   c_fc weight slab   (in x out layout)
    # w2_ref: (th, C)   c_proj weight slab (in x out layout)
    # o_ref:  (tm, C)   output row tile (same block across the hidden axis)
    # acc_ref:(tm, C)   f32 accumulator scratch
    j = pl.program_id(1)

    @pl.when(j == 0)
    def _():
        acc_ref[...] = jnp.zeros_like(acc_ref)

    h = jnp.dot(x_ref[...], w1_ref[...], preferred_element_type=jnp.float32)
    h = _gelu_exact(h)
    acc_ref[...] += jnp.dot(h.astype(w2_ref.dtype), w2_ref[...],
                            preferred_element_type=jnp.float32)

    @pl.when(j == pl.num_programs(1) - 1)
    def _():
        o_ref[...] = acc_ref[...].astype(o_ref.dtype)


# ---------------------------------------------------------------------------
# Tiling heuristics
# ---------------------------------------------------------------------------

def _round_up(a, b):
    return (a + b - 1) // b * b


def _choose_tiles(M, C, H, itemsize, tm=None, th=None,
                  vmem_budget=40 * 1024 * 1024):
    """Pick (tm, th) so the working set fits a conservative per-core budget."""
    if tm is None:
        # Large row tile (256-512) when there are enough rows; sublane mult.
        tm = min(512, _round_up(M, 8))
    tm = _round_up(tm, 8)

    def vmem_usage(th_):
        return (2 * tm * C * itemsize                 # x tiles   (double-buffered)
                + 2 * (C * th_ + th_ * C) * itemsize  # weight slabs (dbl-buffered)
                + 2 * tm * C * itemsize               # out tiles (double-buffered)
                + tm * C * 4                          # f32 accumulator scratch
                + tm * th_ * 4)                       # f32 GELU intermediate

    if th is None:
        th = H
        if vmem_usage(H) > vmem_budget:
            for cand in (2048, 1024, 512, 256, 128):
                if cand < H and H % cand == 0 and vmem_usage(cand) <= vmem_budget:
                    th = cand
                    break
            else:
                th = 128 if H % 128 == 0 else H
    assert H % th == 0, "hidden tile must divide 4*C"
    return tm, th, vmem_usage(th)


def prepare_weights(w_fc, w_proj):
    """One-time conversion from torch nn.Linear layout (out, in) -> (in, out).

    Do this at weight-load time, NOT inside the (jitted) forward path, so the
    transpose is not re-materialized on every call.
    """
    return jnp.asarray(w_fc).T, jnp.asarray(w_proj).T


# ---------------------------------------------------------------------------
# Wrapper
# ---------------------------------------------------------------------------

def mlp_pallas(x, w1, w2, *, tm=None, th=None):
    """Fused GPT-2 MLP forward.

    x:  (B, T, C) activations (f32 or bf16).
    w1: (C, 4C)  c_fc weight in (in, out) layout (see prepare_weights).
    w2: (4C, C)  c_proj weight in (in, out) layout.
    """
    B, T, C = x.shape
    H = w1.shape[1]
    assert w1.shape == (C, H) and w2.shape == (H, C)

    M = B * T
    itemsize = jnp.dtype(x.dtype).itemsize
    tm, th, vmem_est = _choose_tiles(M, C, H, itemsize, tm=tm, th=th)

    # Pad rows to a whole number of row tiles (padded rows are zeros and are
    # sliced off after the call) instead of requiring M % tm == 0.
    n_i = pl.cdiv(M, tm)
    M_pad = n_i * tm
    x2d = x.reshape(M, C)
    if M_pad != M:
        x2d = jnp.pad(x2d, ((0, M_pad - M), (0, 0)))
    n_h = H // th

    cost = pl.CostEstimate(
        flops=2 * M_pad * C * H * 2,            # two matmuls
        transcendentals=M_pad * H,              # erf on the hidden activations
        bytes_accessed=(x2d.size + w1.size + w2.size) * itemsize
                       + M_pad * C * itemsize,  # + output writeback
    )

    # Scoped VMEM: above the 16/32 MiB default limits, below v7x's 64 MiB/TC.
    vmem_limit = int(min(56 * 1024 * 1024,
                         max(32 * 1024 * 1024, 2 * vmem_est)))

    if n_h == 1:
        # FUSED path: weights resident, single matmul pair per row tile, no
        # accumulator scratch, output written directly.
        out2d = pl.pallas_call(
            mlp_kernel_fused,
            out_shape=jax.ShapeDtypeStruct((M_pad, C), x.dtype),
            grid_spec=pltpu.PrefetchScalarGridSpec(
                num_scalar_prefetch=0,
                grid=(n_i,),
                in_specs=[
                    pl.BlockSpec((tm, C), lambda i: (i, 0)),   # activations
                    pl.BlockSpec((C, H), lambda i: (0, 0)),    # c_fc (resident)
                    pl.BlockSpec((H, C), lambda i: (0, 0)),    # c_proj (resident)
                ],
                out_specs=pl.BlockSpec((tm, C), lambda i: (i, 0)),
            ),
            compiler_params=pltpu.CompilerParams(
                dimension_semantics=("parallel",),
                vmem_limit_bytes=vmem_limit,
            ),
            cost_estimate=cost,
        )(x2d, w1, w2)
    else:
        # TILED path: stream hidden-dim weight slabs, accumulate in f32 scratch.
        out2d = pl.pallas_call(
            mlp_kernel_tiled,
            out_shape=jax.ShapeDtypeStruct((M_pad, C), x.dtype),
            grid_spec=pltpu.PrefetchScalarGridSpec(
                num_scalar_prefetch=0,
                grid=(n_i, n_h),
                in_specs=[
                    pl.BlockSpec((tm, C), lambda i, j: (i, 0)),   # activations
                    pl.BlockSpec((C, th), lambda i, j: (0, j)),   # c_fc slab
                    pl.BlockSpec((th, C), lambda i, j: (j, 0)),   # c_proj slab
                ],
                out_specs=pl.BlockSpec((tm, C), lambda i, j: (i, 0)),
                scratch_shapes=[pltpu.VMEM((tm, C), jnp.float32)],
            ),
            compiler_params=pltpu.CompilerParams(
                dimension_semantics=("parallel", "arbitrary"),
                vmem_limit_bytes=vmem_limit,
            ),
            cost_estimate=cost,
        )(x2d, w1, w2)

    if M_pad != M:
        out2d = out2d[:M]
    return out2d.reshape(B, T, C)


def mlp_reference(x, w_fc, w_proj):
    # Pure-JAX reference in f32; w_fc/w_proj in torch (out, in) layout.
    h = jnp.einsum("btc,hc->bth", x.astype(jnp.float32),
                   w_fc.astype(jnp.float32))
    h = _gelu_exact(h)
    y = jnp.einsum("bth,ch->btc", h, w_proj.astype(jnp.float32))
    return y


if __name__ == "__main__":
    # Small config consistent with the module: n_embed=32 (dropout -> identity).
    B, T, C = 2, 8, 32
    H = 4 * C

    key = jax.random.PRNGKey(0)
    kx, k1, k2 = jax.random.split(key, 3)
    x = jax.random.normal(kx, (B, T, C), dtype=jnp.float32)
    # Deterministic init mimicking nn.Linear default scale (+/- 1/sqrt(fan_in)).
    w_fc = jax.random.uniform(k1, (H, C), dtype=jnp.float32,
                              minval=-1.0 / math.sqrt(C), maxval=1.0 / math.sqrt(C))
    w_proj = jax.random.uniform(k2, (C, H), dtype=jnp.float32,
                                minval=-1.0 / math.sqrt(H), maxval=1.0 / math.sqrt(H))

    # One-time weight layout prep (outside any per-step forward path).
    w1, w2 = prepare_weights(w_fc, w_proj)

    # f32 path (fused variant: weights resident).
    out = jax.block_until_ready(mlp_pallas(x, w1, w2))
    ref = mlp_reference(x, w_fc, w_proj)
    assert out.shape == (B, T, C)
    assert jnp.allclose(out, ref.astype(out.dtype), atol=1e-3, rtol=1e-3), \
        "f32 mismatch vs reference"

    # bf16 fast path (MXU-native, no upcasts inside the kernel).
    xb = x.astype(jnp.bfloat16)
    w1b, w2b = w1.astype(jnp.bfloat16), w2.astype(jnp.bfloat16)
    outb = jax.block_until_ready(mlp_pallas(xb, w1b, w2b))
    assert jnp.allclose(outb.astype(jnp.float32), ref, atol=5e-2, rtol=5e-2), \
        "bf16 mismatch vs reference"

    # Exercise row padding + the tiled hidden-reduction (accumulator) path.
    C2 = 128
    H2 = 4 * C2
    k3, k4, k5 = jax.random.split(jax.random.PRNGKey(1), 3)
    x2 = jax.random.normal(k3, (2, 40, C2), dtype=jnp.float32)   # M=80 -> padded
    wf2 = jax.random.uniform(k4, (H2, C2), dtype=jnp.float32,
                             minval=-1.0 / math.sqrt(C2), maxval=1.0 / math.sqrt(C2))
    wp2 = jax.random.uniform(k5, (C2, H2), dtype=jnp.float32,
                             minval=-1.0 / math.sqrt(H2), maxval=1.0 / math.sqrt(H2))
    w1_2, w2_2 = prepare_weights(wf2, wp2)
    out2 = jax.block_until_ready(mlp_pallas(x2, w1_2, w2_2, tm=32, th=128))
    ref2 = mlp_reference(x2, wf2, wp2)
    assert jnp.allclose(out2, ref2.astype(out2.dtype), atol=1e-3, rtol=1e-3), \
        "tiled-reduction mismatch vs reference"

    print("KERNEL_OK")
</pallas_src>

<mosaic_0001>
module attributes {stable_mosaic.version = 11 : i64} {
  func.func @mlp_kernel_fused(%arg0: i32, %arg1: memref<16x32xf32, #tpu.memory_space<vmem>>, %arg2: memref<32x128xf32, #tpu.memory_space<vmem>>, %arg3: memref<128x32xf32, #tpu.memory_space<vmem>>, %arg4: memref<16x32xf32, #tpu.memory_space<vmem>>) attributes {dimension_semantics = [#tpu.dimension_semantics<parallel>], iteration_bounds = array<i64: 1>, scalar_prefetch = 0 : i64, scratch_operands = 0 : i64, tpu.core_type = #tpu.core_type<tc>, window_params = [{transform_indices = @transform_0, window_bounds = array<i64: 16, 32>}, {pipeline_mode = #tpu.pipeline_mode<synchronous>, transform_indices = @transform_1, window_bounds = array<i64: 32, 128>}, {pipeline_mode = #tpu.pipeline_mode<synchronous>, transform_indices = @transform_2, window_bounds = array<i64: 128, 32>}, {transform_indices = @transform_3, window_bounds = array<i64: 16, 32>}]} {
    %c0 = arith.constant 0 : index
    %c0_0 = arith.constant 0 : index
    %0 = vector.load %arg1[%c0, %c0_0] : memref<16x32xf32, #tpu.memory_space<vmem>>, vector<16x32xf32>
    %c0_1 = arith.constant 0 : index
    %c0_2 = arith.constant 0 : index
    %1 = vector.load %arg2[%c0_1, %c0_2] : memref<32x128xf32, #tpu.memory_space<vmem>>, vector<32x128xf32>
    %cst = arith.constant dense<0.000000e+00> : vector<16x128xf32>
    %2 = tpu.matmul %0, %1, %cst {dimension_numbers = #tpu.dot_dimension_numbers<[1], [0], [0], [1], [0, 0, 1, 1], [], []>} : vector<16x32xf32>, vector<32x128xf32>, vector<16x128xf32> -> vector<16x128xf32>
    %cst_3 = arith.constant 5.000000e-01 : f32
    %3 = vector.broadcast %cst_3 : f32 to vector<16x128xf32>
    %4 = arith.mulf %3, %2 : vector<16x128xf32>
    %cst_4 = arith.constant 0.707106769 : f32
    %5 = vector.broadcast %cst_4 : f32 to vector<16x128xf32>
    %6 = arith.mulf %2, %5 : vector<16x128xf32>
    %7 = math.erf %6 : vector<16x128xf32>
    %cst_5 = arith.constant 1.000000e+00 : f32
    %8 = vector.broadcast %cst_5 : f32 to vector<16x128xf32>
    %9 = arith.addf %8, %7 : vector<16x128xf32>
    %10 = arith.mulf %4, %9 : vector<16x128xf32>
    %c0_6 = arith.constant 0 : index
    %c0_7 = arith.constant 0 : index
    %11 = vector.load %arg3[%c0_6, %c0_7] : memref<128x32xf32, #tpu.memory_space<vmem>>, vector<128x32xf32>
    %cst_8 = arith.constant dense<0.000000e+00> : vector<16x32xf32>
    %12 = tpu.matmul %10, %11, %cst_8 {dimension_numbers = #tpu.dot_dimension_numbers<[1], [0], [0], [1], [0, 0, 1, 1], [], []>} : vector<16x128xf32>, vector<128x32xf32>, vector<16x32xf32> -> vector<16x32xf32>
    %c0_9 = arith.constant 0 : index
    %c0_10 = arith.constant 0 : index
    %13 = vector.load %arg4[%c0_9, %c0_10] : memref<16x32xf32, #tpu.memory_space<vmem>>, vector<16x32xf32>
    tpu.vector_store %arg4[%c0_9, %c0_10], %12 {strides = array<i32>} : memref<16x32xf32, #tpu.memory_space<vmem>>, vector<16x32xf32>,
    return
  }
  func.func @transform_0(%arg0: i32) -> (i32, i32) {
    %c0_i32 = arith.constant 0 : i32
    %c0_i32_0 = arith.constant 0 : i32
    return %arg0, %c0_i32 : i32, i32
  }
  func.func @transform_1(%arg0: i32) -> (i32, i32) {
    %c0_i32 = arith.constant 0 : i32
    %c0_i32_0 = arith.constant 0 : i32
    %c0_i32_1 = arith.constant 0 : i32
    return %c0_i32, %c0_i32_0 : i32, i32
  }
  func.func @transform_2(%arg0: i32) -> (i32, i32) {
    %c0_i32 = arith.constant 0 : i32
    %c0_i32_0 = arith.constant 0 : i32
    %c0_i32_1 = arith.constant 0 : i32
    return %c0_i32, %c0_i32_0 : i32, i32
  }
  func.func @transform_3(%arg0: i32) -> (i32, i32) {
    %c0_i32 = arith.constant 0 : i32
    %c0_i32_0 = arith.constant 0 : i32
    return %arg0, %c0_i32 : i32, i32
  }
}

</mosaic_0001>

<llo_original>
// kernel: tpu_custom_call.1
$region0: #{tpu_custom_call.1}
  #allocation0 [shape = 'u32[]', space=smem, size = 0x4, offset = 0x4, fixed_abs, tag = 'smem constant byte address 0x4 - core index']
  #allocation1 [shape = 'u32[144,128]{1,0:T(1,128)}', space=vmem, size = 0x12000, scoped, tag = 'internal scratch']
  %s0 = inlined_call_operand.vmem [shape: f32[16,32], index: 0, kind: input, shape index: {}]
  %s1 = inlined_call_operand.vmem [shape: f32[32,128], index: 1, kind: input, shape index: {}]
  %s2 = inlined_call_operand.vmem [shape: f32[128,32], index: 2, kind: input, shape index: {}]
  %s3 = inlined_call_operand.hbm [shape: f32[16,32], index: 3, kind: output, shape index: {}]
  %s4 = sld [smem:[#allocation0]]
  $region22: #{tpu_custom_call.1} parent=0
    _
  %s6 = ssub.s32 1, %s4
  %s7 = scalar_select 0, %s6, %s4
  $region1: #{tpu_custom_call.1} parent=0
    #allocation2 [shape = 'u8[8192]{0}', space=vmem, size = 0x2000, scoped, tag = 'output window, operand 0, single buffered']
    #allocation3 [shape = 's32[1]{0}', space=sflag, size = 0x4, scoped, tag = 'scoped memory for tpu_custom_call.1']
    %8 = vsyncpa [#allocation3], 0
    // Predicated region
    $region2: #{tpu_custom_call.1} parent=1 // pred_check
      _
    $region3: #{tpu_custom_call.1} parent=1 // pred_check_branch
      %10 = sbr.rel (0) target = $region5
    $region4: #{tpu_custom_call.1} parent=1 // pred_region
      _
    $region5: #{tpu_custom_call.1} parent=1 // pred_fallthru
      _
    // Predicated region
    $region6: #{tpu_custom_call.1} parent=1 // pred_check
      _
    $region7: #{tpu_custom_call.1} parent=1 // pred_check_branch
      %12 = sbr.rel (0) target = $region9
    $region8: #{tpu_custom_call.1} parent=1 // pred_region
      _
    $region9: #{tpu_custom_call.1} parent=1 // pred_fallthru
      _
    // Predicated region
    $region10: #{tpu_custom_call.1} parent=1 // pred_check
      _
    $region11: #{tpu_custom_call.1} parent=1 // pred_check_branch
      %14 = sbr.rel (0) target = $region13
    $region12: #{tpu_custom_call.1} parent=1 // pred_region
      _
    $region13: #{tpu_custom_call.1} parent=1 // pred_fallthru
      _
    %v15 = vld [vmem:[%s0] sm:$0xff]
    %v16 = vld [vmem:[%s0 + $0x8] sm:$0xff]
    %v17 = vld [vmem:[%s1] sm:$0xff]
    %v18 = vld [vmem:[%s1 + $0x8] sm:$0xff]
    %v19 = vld [vmem:[%s1 + $0x10] sm:$0xff]
    %v20 = vld [vmem:[%s1 + $0x18] sm:$0xff]
    %vm21 = vcmask 261120
    %v23 = vsel %vm21, %v15, 0
    %v26 = vsel %vm21, %v16, 0
    %28 = vmatprep.subr.mxu0 0.0
    %29 = vmatpush1.msra.mxu0 0.0
    %30 = vmatprep.subr.mxu0 0.0
    %31 = vmatpush1.msra.mxu0 0.0
    %32 = vmatprep.subr.mxu0 0.0
    %33 = vmatpush1.msra.mxu0 0.0
    %34 = vmatprep.subr.mxu0 0.0
    %35 = vmatpush1.msra.mxu0 0.0
    %36 = vmatprep.subr.mxu0 0.0
    %37 = vmatpush1.msra.mxu0 0.0
    %38 = vmatprep.subr.mxu0 0.0
    %39 = vmatpush1.msra.mxu0 0.0
    %40 = vmatprep.subr.mxu0 0.0
    %41 = vmatpush1.msra.mxu0 0.0
    %42 = vmatprep.subr.mxu0 0.0
    %43 = vmatpush1.msra.mxu0 0.0
    %44 = vmatprep.subr.mxu0 0.0
    %45 = vmatpush1.msra.mxu0 0.0
    %46 = vmatprep.subr.mxu0 0.0
    %47 = vmatpush1.msra.mxu0 0.0
    %48 = vmatprep.subr.mxu0 0.0
    %49 = vmatpush1.msra.mxu0 0.0
    %50 = vmatprep.subr.mxu0 0.0
    %51 = vmatpush1.msra.mxu0 0.0
    %52 = vmatprep.subr.mxu0 0.0
    %53 = vmatpush1.msra.mxu0 %v20
    %54 = vmatprep.subr.mxu0 0.0
    %55 = vmatpush1.msra.mxu0 %v19
    %56 = vmatprep.subr.mxu0 0.0
    %57 = vmatpush1.msra.mxu0 %v18
    %58 = vmatprep.subr.mxu0 0.0
    %59 = vmatpush1.msra.mxu0 %v17
    %60 = vmatprep.subr.mxu0 0.0
    %61 = vmatpush2.msra.mxu0 0.0
    %62 = vmatprep.subr.mxu0 0.0
    %63 = vmatpush2.msra.mxu0 0.0
    %64 = vmatprep.subr.mxu0 0.0
    %65 = vmatpush2.msra.mxu0 0.0
    %66 = vmatprep.subr.mxu0 0.0
    %67 = vmatpush2.msra.mxu0 0.0
    %68 = vmatprep.subr.mxu0 0.0
    %69 = vmatpush2.msra.mxu0 0.0
    %70 = vmatprep.subr.mxu0 0.0
    %71 = vmatpush2.msra.mxu0 0.0
    %72 = vmatprep.subr.mxu0 0.0
    %73 = vmatpush2.msra.mxu0 0.0
    %74 = vmatprep.subr.mxu0 0.0
    %75 = vmatpush2.msra.mxu0 0.0
    %76 = vmatprep.subr.mxu0 0.0
    %77 = vmatpush2.msra.mxu0 0.0
    %78 = vmatprep.subr.mxu0 0.0
    %79 = vmatpush2.msra.mxu0 0.0
    %80 = vmatprep.subr.mxu0 0.0
    %81 = vmatpush2.msra.mxu0 0.0
    %82 = vmatprep.subr.mxu0 0.0
    %83 = vmatpush2.msra.mxu0 0.0
    %84 = vmatprep.subr.mxu0 0.0
    %85 = vmatpush2.msra.mxu0 0.0
    %86 = vmatprep.subr.mxu0 0.0
    %87 = vmatpush2.msra.mxu0 0.0
    %88 = vmatprep.subr.mxu0 0.0
    %89 = vmatpush2.msra.mxu0 0.0
    %90 = vmatprep.subr.mxu0 0.0
    %91 = vmatpush2.msra.mxu0 0.0
    %92 = vmatprep.mubr.f32.mxu0 0.0
    %93 = vmatmul.mubr.f32.gmra.mxu0 %v23
    %v94 = vpop.f32.mrf.mxu0
    %v95 = vadd.f32 0.0, %v94
    %v96 = vpop.f32.mrf.mxu0
    %97 = vmatprep.mubr.f32.mxu0 0.0
    %98 = vmatmul.mubr.f32.gmra.mxu0 %v26
    %v99 = vpop.f32.mrf.mxu0
    %v100 = vadd.f32 0.0, %v99
    %v101 = vpop.f32.mrf.mxu0
    %102 = vdwg.mxu0
    %v103 = vmul.f32 %v95, 0.5
    %v104 = vmul.f32 %v100, 0.5
    %v105 = vmul.f32 %v95, 0.70710677
    %v106 = vmul.f32 %v100, 0.70710677
    %v107 = verf.f32.pop %v105
    %v108 = verf.f32.pop %v106
    %v109 = vadd.f32 %v107, 1.0
    %v110 = vadd.f32 %v108, 1.0
    %v111 = vmul.f32 %v103, %v109
    %v112 = vmul.f32 %v104, %v110
    %v113 = vld [vmem:[%s2] sm:$0xff]
    %v114 = vld [vmem:[%s2 + $0x8] sm:$0xff]
    %v115 = vld [vmem:[%s2 + $0x10] sm:$0xff]
    %v116 = vld [vmem:[%s2 + $0x18] sm:$0xff]
    %v117 = vld [vmem:[%s2 + $0x20] sm:$0xff]
    %v118 = vld [vmem:[%s2 + $0x28] sm:$0xff]
    %v119 = vld [vmem:[%s2 + $0x30] sm:$0xff]
    %v120 = vld [vmem:[%s2 + $0x38] sm:$0xff]
    %v121 = vld [vmem:[%s2 + $0x40] sm:$0xff]
    %v122 = vld [vmem:[%s2 + $0x48] sm:$0xff]
    %v123 = vld [vmem:[%s2 + $0x50] sm:$0xff]
    %v124 = vld [vmem:[%s2 + $0x58] sm:$0xff]
    %v125 = vld [vmem:[%s2 + $0x60] sm:$0xff]
    %v126 = vld [vmem:[%s2 + $0x68] sm:$0xff]
    %v127 = vld [vmem:[%s2 + $0x70] sm:$0xff]
    %v128 = vld [vmem:[%s2 + $0x78] sm:$0xff]
    %129 = vmatprep.subr.mxu0 0.0
    %130 = vmatpush1.msra.mxu0 %v128
    %131 = vmatprep.subr.mxu0 0.0
    %132 = vmatpush1.msra.mxu0 %v127
    %133 = vmatprep.subr.mxu0 0.0
    %134 = vmatpush1.msra.mxu0 %v126
    %135 = vmatprep.subr.mxu0 0.0
    %136 = vmatpush1.msra.mxu0 %v125
    %137 = vmatprep.subr.mxu0 0.0
    %138 = vmatpush1.msra.mxu0 %v124
    %139 = vmatprep.subr.mxu0 0.0
    %140 = vmatpush1.msra.mxu0 %v123
    %141 = vmatprep.subr.mxu0 0.0
    %142 = vmatpush1.msra.mxu0 %v122
    %143 = vmatprep.subr.mxu0 0.0
    %144 = vmatpush1.msra.mxu0 %v121
    %145 = vmatprep.subr.mxu0 0.0
    %146 = vmatpush1.msra.mxu0 %v120
    %147 = vmatprep.subr.mxu0 0.0
    %148 = vmatpush1.msra.mxu0 %v119
    %149 = vmatprep.subr.mxu0 0.0
    %150 = vmatpush1.msra.mxu0 %v118
    %151 = vmatprep.subr.mxu0 0.0
    %152 = vmatpush1.msra.mxu0 %v117
    %153 = vmatprep.subr.mxu0 0.0
    %154 = vmatpush1.msra.mxu0 %v116
    %155 = vmatprep.subr.mxu0 0.0
    %156 = vmatpush1.msra.mxu0 %v115
    %157 = vmatprep.subr.mxu0 0.0
    %158 = vmatpush1.msra.mxu0 %v114
    %159 = vmatprep.subr.mxu0 0.0
    %160 = vmatpush1.msra.mxu0 %v113
    %161 = vmatprep.subr.mxu0 0.0
    %162 = vmatpush2.msra.mxu0 0.0
    %163 = vmatprep.subr.mxu0 0.0
    %164 = vmatpush2.msra.mxu0 0.0
    %165 = vmatprep.subr.mxu0 0.0
    %166 = vmatpush2.msra.mxu0 0.0
    %167 = vmatprep.subr.mxu0 0.0
    %168 = vmatpush2.msra.mxu0 0.0
    %169 = vmatprep.subr.mxu0 0.0
    %170 = vmatpush2.msra.mxu0 0.0
    %171 = vmatprep.subr.mxu0 0.0
    %172 = vmatpush2.msra.mxu0 0.0
    %173 = vmatprep.subr.mxu0 0.0
    %174 = vmatpush2.msra.mxu0 0.0
    %175 = vmatprep.subr.mxu0 0.0
    %176 = vmatpush2.msra.mxu0 0.0
    %177 = vmatprep.subr.mxu0 0.0
    %178 = vmatpush2.msra.mxu0 0.0
    %179 = vmatprep.subr.mxu0 0.0
    %180 = vmatpush2.msra.mxu0 0.0
    %181 = vmatprep.subr.mxu0 0.0
    %182 = vmatpush2.msra.mxu0 0.0
    %183 = vmatprep.subr.mxu0 0.0
    %184 = vmatpush2.msra.mxu0 0.0
    %185 = vmatprep.subr.mxu0 0.0
    %186 = vmatpush2.msra.mxu0 0.0
    %187 = vmatprep.subr.mxu0 0.0
    %188 = vmatpush2.msra.mxu0 0.0
    %189 = vmatprep.subr.mxu0 0.0
    %190 = vmatpush2.msra.mxu0 0.0
    %191 = vmatprep.subr.mxu0 0.0
    %192 = vmatpush2.msra.mxu0 0.0
    %193 = vmatprep.mubr.f32.mxu0 0.0
    %194 = vmatmul.mubr.f32.gmra.mxu0 %v111
    %v195 = vpop.f32.mrf.mxu0
    %v196 = vadd.f32 0.0, %v195
    %v197 = vpop.f32.mrf.mxu0
    %198 = vmatprep.mubr.f32.mxu0 0.0
    %199 = vmatmul.mubr.f32.gmra.mxu0 %v112
    %v200 = vpop.f32.mrf.mxu0
    %v201 = vadd.f32 0.0, %v200
    %v202 = vpop.f32.mrf.mxu0
    %203 = vdwg.mxu0
    %204 = vst.msk [vmem:[#allocation2] sm:$0xff] %vm21, %v196
    %205 = vst.msk [vmem:[#allocation2 + $0x8] sm:$0xff] %vm21, %v201
    // Predicated region
    $region14: #{tpu_custom_call.1} parent=1 // pred_check
      _
    $region15: #{tpu_custom_call.1} parent=1 // pred_check_branch
      %207 = sbr.rel (0) target = $region17
    $region16: #{tpu_custom_call.1} parent=1 // pred_region
      %s209 = ssub.s32 256, 256
      %210 = vsyncadd [#allocation3], %s209
      %s211 = sshll.u32 [#allocation2], 4
      %s212 = int_to_ptr.vmem [resolvable:$true] %s211
      %217 = dma.vmem_to_hbm [thread:$0]  %s212, 256, %s3, [#allocation3], 128, 128, 8
    $region17: #{tpu_custom_call.1} parent=1 // pred_fallthru
      _
    // Predicated region
    $region18: #{tpu_custom_call.1} parent=1 // pred_check
      _
    $region19: #{tpu_custom_call.1} parent=1 // pred_check_branch
      %219 = sbr.rel (0) target = $region21
    $region20: #{tpu_custom_call.1} parent=1 // pred_region
      %220 = dma.done [#allocation3], 256
    $region21: #{tpu_custom_call.1} parent=1 // pred_fallthru
      _
    %221 = vsyncpa [#allocation3], 1

</llo_original>
